<compile_context>
chip_gen: v7x
topology: tpu7x:2x2x1
jax: 0.10.0
libtpu: 0.0.40
codegen_flags: <defaults>
</compile_context>

<pallas_src>
import functools

import jax
import jax.numpy as jnp
from jax.experimental import pallas as pl
from jax.experimental.pallas import tpu as pltpu

HIDDEN = 128
LANE = 128
DEFAULT_TILE_B = 2048


def _round_up(x, m):
    return ((x + m - 1) // m) * m


def _valuenet_kernel(x_ref, w1_ref, b1_ref, w2_ref, b2_ref, w3_ref, b3_ref, out_ref):
    # Layer 1: Linear(s_dim, 128) + ReLU. bf16 x bf16 -> f32 accumulate on the MXU; f32 VPU epilogue.
    h1 = jnp.dot(x_ref[...], w1_ref[...], preferred_element_type=jnp.float32)
    h1 = jnp.maximum(h1 + b1_ref[...], 0.0)
    # Layer 2: Linear(128, 128) + ReLU.
    h2 = jnp.dot(h1.astype(jnp.bfloat16), w2_ref[...], preferred_element_type=jnp.float32)
    h2 = jnp.maximum(h2 + b2_ref[...], 0.0)
    # Value head, batch-in-lanes: transpose h2 (XLU, tb/128 128x128 tiles) and hit the MXU with
    # the broadcast w3 row; all 8 result sublanes are identical, keep sublane 0.
    h2t = jnp.transpose(h2).astype(jnp.bfloat16)                        # (128, tb)
    v = jnp.dot(w3_ref[...], h2t, preferred_element_type=jnp.float32)   # (8, tb)
    out_ref[...] = (v[0:1, :] + b3_ref[0, 0]).astype(out_ref.dtype)     # lane-dense (1, tb) store


@functools.partial(jax.jit, static_argnames=("tile_b",))
def valuenet_forward(x, w1, b1, w2, b2, w3, b3, *, tile_b=DEFAULT_TILE_B):
    """x: [B, s_dim] float32. Returns value: [B] float32 (== torch value[:, 0])."""
    B, s_dim = x.shape
    # Batch tile: multiple of 128 so the (1, tb) output block stays lane-aligned (unmasked vst).
    tb = _round_up(min(max(tile_b, LANE), _round_up(B, LANE)), LANE)
    # v7x megacore: if a single tile would cover the batch but it holds >= 2 lane-groups of rows,
    # split it so the "parallel" grid axis has >= 2 steps (harmless on single-TC v5e/v6e).
    if -(-B // tb) == 1 and tb >= 2 * LANE:
        tb = _round_up(tb // 2, LANE)
    b_pad = _round_up(B, tb)
    n_tiles = b_pad // tb

    # bf16 MXU operands (halves the streamed x bytes); f32 accumulation requested in-kernel.
    x_bf = x.astype(jnp.bfloat16)
    if b_pad != B:
        x_bf = jnp.pad(x_bf, ((0, b_pad - B), (0, 0)))
    w1_bf = w1.astype(jnp.bfloat16)
    w2_bf = w2.astype(jnp.bfloat16)
    # Head weight as an [8, 128] bf16 tile: the [128, 1] column broadcast over 8 sublanes.
    w3_row8 = jnp.broadcast_to(jnp.reshape(w3, (1, HIDDEN)), (8, HIDDEN)).astype(jnp.bfloat16)
    b1_r = jnp.reshape(b1, (1, HIDDEN)).astype(jnp.float32)
    b2_r = jnp.reshape(b2, (1, HIDDEN)).astype(jnp.float32)
    b3_s = jnp.reshape(b3, (1, 1)).astype(jnp.float32)

    cost = pl.CostEstimate(
        flops=2 * b_pad * (s_dim * HIDDEN + HIDDEN * HIDDEN + HIDDEN),
        transcendentals=0,
        bytes_accessed=(b_pad * s_dim * 2 + b_pad * 4
                        + (s_dim * HIDDEN + HIDDEN * HIDDEN + 8 * HIDDEN) * 2
                        + 2 * HIDDEN * 4 + 4),
    )

    out = pl.pallas_call(
        _valuenet_kernel,
        out_shape=jax.ShapeDtypeStruct((1, b_pad), jnp.float32),
        grid=(n_tiles,),
        in_specs=[
            pl.BlockSpec((tb, s_dim), lambda i: (i, 0)),        # x: streamed batch tiles
            pl.BlockSpec((s_dim, HIDDEN), lambda i: (0, 0)),    # w1: VMEM-resident
            pl.BlockSpec((1, HIDDEN), lambda i: (0, 0)),        # b1
            pl.BlockSpec((HIDDEN, HIDDEN), lambda i: (0, 0)),   # w2
            pl.BlockSpec((1, HIDDEN), lambda i: (0, 0)),        # b2
            pl.BlockSpec((8, HIDDEN), lambda i: (0, 0)),        # w3 row, broadcast to 8 sublanes
            pl.BlockSpec(memory_space=pltpu.SMEM),              # b3 scalar (no per-step VMEM DMA)
        ],
        out_specs=pl.BlockSpec((1, tb), lambda i: (0, i)),      # lane-dense output row
        compiler_params=pltpu.CompilerParams(
            dimension_semantics=("parallel",),  # v7x: shard batch tiles across both TCs
        ),
        cost_estimate=cost,
    )(x_bf, w1_bf, b1_r, w2_bf, b2_r, w3_row8, b3_s)
    return out[0, :B]


def _orthogonal(key, shape, gain):
    """Deterministic orthogonal init (matches nn.init.orthogonal_ semantics)."""
    rows, cols = shape
    n = max(rows, cols)
    a = jax.random.normal(key, (n, n), dtype=jnp.float32)
    q, r = jnp.linalg.qr(a)
    d = jnp.diag(r)
    q = q * jnp.where(d == 0, 1.0, jnp.sign(d))
    return (gain * q[:rows, :cols]).astype(jnp.float32)


def init_valuenet_params(key, s_dim):
    gain = float(jnp.sqrt(2.0))  # nn.init.calculate_gain('relu')
    k1, k2, k3 = jax.random.split(key, 3)
    # Stored as [in, out] so the kernel does x @ W; biases initialized to 0 per init_.
    w1 = _orthogonal(k1, (s_dim, HIDDEN), gain)
    b1 = jnp.zeros((1, HIDDEN), jnp.float32)
    w2 = _orthogonal(k2, (HIDDEN, HIDDEN), gain)
    b2 = jnp.zeros((1, HIDDEN), jnp.float32)
    w3 = _orthogonal(k3, (HIDDEN, 1), gain)
    b3 = jnp.zeros((1, 1), jnp.float32)
    return w1, b1, w2, b2, w3, b3


def _reference(x, w1, b1, w2, b2, w3, b3):
    h1 = jax.nn.relu(x @ w1 + b1)
    h2 = jax.nn.relu(h1 @ w2 + b2)
    return (h2 @ w3 + b3)[:, 0]


if __name__ == "__main__":
    key = jax.random.PRNGKey(0)
    k_param, k_x1, k_x2, k_x3 = jax.random.split(key, 4)

    s_dim = 32
    params = init_valuenet_params(k_param, s_dim)
    # bf16 MXU operands vs. f32 reference: relaxed tolerance (f32 accumulation keeps error small).
    TOL = dict(atol=5e-2, rtol=5e-2)

    # Small case (single 128-row tile, padded from B=8).
    x_small = jax.random.normal(k_x1, (8, s_dim), dtype=jnp.float32)
    v_small = valuenet_forward(x_small, *params)
    jax.block_until_ready(v_small)
    assert v_small.shape == (8,)
    assert jnp.allclose(v_small, _reference(x_small, *params), **TOL)

    # Multi-tile + padding path: B=300 with tile_b=128 -> grid of 3 tiles, padded to 384 rows.
    x_big = jax.random.normal(k_x2, (300, s_dim), dtype=jnp.float32)
    v_big = valuenet_forward(x_big, *params, tile_b=128)
    jax.block_until_ready(v_big)
    assert v_big.shape == (300,)
    assert jnp.allclose(v_big, _reference(x_big, *params), **TOL)

    # Default tile path with the v7x even-grid split: B=600 -> tb=384, grid of 2 tiles.
    x_mid = jax.random.normal(k_x3, (600, s_dim), dtype=jnp.float32)
    v_mid = valuenet_forward(x_mid, *params)
    jax.block_until_ready(v_mid)
    assert v_mid.shape == (600,)
    assert jnp.allclose(v_mid, _reference(x_mid, *params), **TOL)

    print("KERNEL_OK")
</pallas_src>

<mosaic_0001>
module attributes {stable_mosaic.version = 11 : i64} {
  func.func @_valuenet_kernel(%arg0: i32, %arg1: memref<128x32xbf16, #tpu.memory_space<vmem>>, %arg2: memref<32x128xbf16, #tpu.memory_space<vmem>>, %arg3: memref<1x128xf32, #tpu.memory_space<vmem>>, %arg4: memref<128x128xbf16, #tpu.memory_space<vmem>>, %arg5: memref<1x128xf32, #tpu.memory_space<vmem>>, %arg6: memref<8x128xbf16, #tpu.memory_space<vmem>>, %arg7: memref<1x1xf32, #tpu.memory_space<smem>>, %arg8: memref<1x128xf32, #tpu.memory_space<vmem>>) attributes {dimension_semantics = [#tpu.dimension_semantics<parallel>], iteration_bounds = array<i64: 1>, scalar_prefetch = 0 : i64, scratch_operands = 0 : i64, tpu.core_type = #tpu.core_type<tc>, window_params = [{transform_indices = @transform_0, window_bounds = array<i64: 128, 32>}, {pipeline_mode = #tpu.pipeline_mode<synchronous>, transform_indices = @transform_1, window_bounds = array<i64: 32, 128>}, {pipeline_mode = #tpu.pipeline_mode<synchronous>, transform_indices = @transform_2, window_bounds = array<i64: 1, 128>}, {pipeline_mode = #tpu.pipeline_mode<synchronous>, transform_indices = @transform_3, window_bounds = array<i64: 128, 128>}, {pipeline_mode = #tpu.pipeline_mode<synchronous>, transform_indices = @transform_4, window_bounds = array<i64: 1, 128>}, {pipeline_mode = #tpu.pipeline_mode<synchronous>, transform_indices = @transform_5, window_bounds = array<i64: 8, 128>}, {transform_indices = @transform_6, window_bounds = array<i64: 1, 1>}, {transform_indices = @transform_7, window_bounds = array<i64: 1, 128>}]} {
    %c0 = arith.constant 0 : index
    %c0_0 = arith.constant 0 : index
    %0 = vector.load %arg1[%c0, %c0_0] : memref<128x32xbf16, #tpu.memory_space<vmem>>, vector<128x32xbf16>
    %c0_1 = arith.constant 0 : index
    %c0_2 = arith.constant 0 : index
    %1 = vector.load %arg2[%c0_1, %c0_2] : memref<32x128xbf16, #tpu.memory_space<vmem>>, vector<32x128xbf16>
    %cst = arith.constant dense<0.000000e+00> : vector<128x128xf32>
    %2 = tpu.matmul %0, %1, %cst {dimension_numbers = #tpu.dot_dimension_numbers<[1], [0], [0], [1], [0, 0, 1, 1], [], []>} : vector<128x32xbf16>, vector<32x128xbf16>, vector<128x128xf32> -> vector<128x128xf32>
    %c0_3 = arith.constant 0 : index
    %c0_4 = arith.constant 0 : index
    %3 = vector.load %arg3[%c0_3, %c0_4] : memref<1x128xf32, #tpu.memory_space<vmem>>, vector<1x128xf32>
    %4 = vector.broadcast %3 : vector<1x128xf32> to vector<128x128xf32>
    %5 = arith.addf %2, %4 : vector<128x128xf32>
    %cst_5 = arith.constant 0.000000e+00 : f32
    %6 = vector.broadcast %cst_5 : f32 to vector<128x128xf32>
    %7 = arith.maximumf %5, %6 : vector<128x128xf32>
    %8 = arith.truncf %7 : vector<128x128xf32> to vector<128x128xbf16>
    %c0_6 = arith.constant 0 : index
    %c0_7 = arith.constant 0 : index
    %9 = vector.load %arg4[%c0_6, %c0_7] : memref<128x128xbf16, #tpu.memory_space<vmem>>, vector<128x128xbf16>
    %cst_8 = arith.constant dense<0.000000e+00> : vector<128x128xf32>
    %10 = tpu.matmul %8, %9, %cst_8 {dimension_numbers = #tpu.dot_dimension_numbers<[1], [0], [0], [1], [0, 0, 1, 1], [], []>} : vector<128x128xbf16>, vector<128x128xbf16>, vector<128x128xf32> -> vector<128x128xf32>
    %c0_9 = arith.constant 0 : index
    %c0_10 = arith.constant 0 : index
    %11 = vector.load %arg5[%c0_9, %c0_10] : memref<1x128xf32, #tpu.memory_space<vmem>>, vector<1x128xf32>
    %12 = vector.broadcast %11 : vector<1x128xf32> to vector<128x128xf32>
    %13 = arith.addf %10, %12 : vector<128x128xf32>
    %cst_11 = arith.constant 0.000000e+00 : f32
    %14 = vector.broadcast %cst_11 : f32 to vector<128x128xf32>
    %15 = arith.maximumf %13, %14 : vector<128x128xf32>
    %16 = tpu.transpose %15, [1, 0] : vector<128x128xf32> -> vector<128x128xf32>
    %17 = arith.truncf %16 : vector<128x128xf32> to vector<128x128xbf16>
    %c0_12 = arith.constant 0 : index
    %c0_13 = arith.constant 0 : index
    %18 = vector.load %arg6[%c0_12, %c0_13] : memref<8x128xbf16, #tpu.memory_space<vmem>>, vector<8x128xbf16>
    %cst_14 = arith.constant dense<0.000000e+00> : vector<8x128xf32>
    %19 = tpu.matmul %18, %17, %cst_14 {dimension_numbers = #tpu.dot_dimension_numbers<[1], [0], [0], [1], [0, 0, 1, 1], [], []>} : vector<8x128xbf16>, vector<128x128xbf16>, vector<8x128xf32> -> vector<8x128xf32>
    %20 = vector.extract_strided_slice %19 {offsets = [0, 0], sizes = [1, 128], strides = [1, 1]} : vector<8x128xf32> to vector<1x128xf32>
    %c0_15 = arith.constant 0 : index
    %c0_16 = arith.constant 0 : index
    %21 = memref.load %arg7[%c0_15, %c0_16] : memref<1x1xf32, #tpu.memory_space<smem>>
    %22 = vector.broadcast %21 : f32 to vector<1x128xf32>
    %23 = arith.addf %20, %22 : vector<1x128xf32>
    %c0_17 = arith.constant 0 : index
    %c0_18 = arith.constant 0 : index
    %24 = vector.load %arg8[%c0_17, %c0_18] : memref<1x128xf32, #tpu.memory_space<vmem>>, vector<1x128xf32>
    tpu.vector_store %arg8[%c0_17, %c0_18], %23 {strides = array<i32>} : memref<1x128xf32, #tpu.memory_space<vmem>>, vector<1x128xf32>,
    return
  }
  func.func @transform_0(%arg0: i32) -> (i32, i32) {
    %c0_i32 = arith.constant 0 : i32
    %c0_i32_0 = arith.constant 0 : i32
    return %arg0, %c0_i32 : i32, i32
  }
  func.func @transform_1(%arg0: i32) -> (i32, i32) {
    %c0_i32 = arith.constant 0 : i32
    %c0_i32_0 = arith.constant 0 : i32
    %c0_i32_1 = arith.constant 0 : i32
    return %c0_i32, %c0_i32_0 : i32, i32
  }
  func.func @transform_2(%arg0: i32) -> (i32, i32) {
    %c0_i32 = arith.constant 0 : i32
    %c0_i32_0 = arith.constant 0 : i32
    %c0_i32_1 = arith.constant 0 : i32
    return %c0_i32, %c0_i32_0 : i32, i32
  }
  func.func @transform_3(%arg0: i32) -> (i32, i32) {
    %c0_i32 = arith.constant 0 : i32
    %c0_i32_0 = arith.constant 0 : i32
    %c0_i32_1 = arith.constant 0 : i32
    return %c0_i32, %c0_i32_0 : i32, i32
  }
  func.func @transform_4(%arg0: i32) -> (i32, i32) {
    %c0_i32 = arith.constant 0 : i32
    %c0_i32_0 = arith.constant 0 : i32
    %c0_i32_1 = arith.constant 0 : i32
    return %c0_i32, %c0_i32_0 : i32, i32
  }
  func.func @transform_5(%arg0: i32) -> (i32, i32) {
    %c0_i32 = arith.constant 0 : i32
    %c0_i32_0 = arith.constant 0 : i32
    %c0_i32_1 = arith.constant 0 : i32
    return %c0_i32, %c0_i32_0 : i32, i32
  }
  func.func @transform_6(%arg0: i32) -> (i32, i32) {
    %c0_i32 = arith.constant 0 : i32
    %c0_i32_0 = arith.constant 0 : i32
    %c0_i32_1 = arith.constant 0 : i32
    return %c0_i32, %c0_i32_0 : i32, i32
  }
  func.func @transform_7(%arg0: i32) -> (i32, i32) {
    %c0_i32 = arith.constant 0 : i32
    %c0_i32_0 = arith.constant 0 : i32
    return %c0_i32, %arg0 : i32, i32
  }
}

</mosaic_0001>

<llo_original>
// kernel: valuenet_forward.1
$region0: #{valuenet_forward.1}
  #allocation0 [shape = 'u32[]', space=smem, size = 0x4, offset = 0x4, fixed_abs, tag = 'smem constant byte address 0x4 - core index']
  #allocation1 [shape = 'u32[144,128]{1,0:T(1,128)}', space=vmem, size = 0x12000, scoped, tag = 'internal scratch']
  #allocation2 [shape = 'f32[1,1]{1,0:T(1,128)S(6)}', space=smem, size = 0x200, scoped, tag = 'scoped memory for valuenet_forward.1']
  %s0 = inlined_call_operand.vmem [shape: bf16[128,32], index: 0, kind: input, shape index: {}]
  %s1 = inlined_call_operand.vmem [shape: bf16[32,128], index: 1, kind: input, shape index: {}]
  %s2 = inlined_call_operand.vmem [shape: f32[1,128], index: 2, kind: input, shape index: {}]
  %s3 = inlined_call_operand.vmem [shape: bf16[128,128], index: 3, kind: input, shape index: {}]
  %s4 = inlined_call_operand.vmem [shape: f32[1,128], index: 4, kind: input, shape index: {}]
  %s5 = inlined_call_operand.vmem [shape: bf16[8,128], index: 5, kind: input, shape index: {}]
  %s6 = inlined_call_operand.<no memory space> [shape: f32[1,1], index: 6, kind: input, shape index: {}]
  %s7 = inlined_call_operand.vmem [shape: f32[1,128], index: 7, kind: output, shape index: {}]
  %s8 = sld [smem:[#allocation0]]
  $region38: #{valuenet_forward.1} parent=0
    _
  %s10 = ssub.s32 1, %s8
  %s11 = scalar_select 0, %s10, %s8
  %12 = sst [smem:[#allocation2]] %s6
  // Predicated region
  $region2: #{valuenet_forward.1} parent=0 // pred_check
    _
  $region3: #{valuenet_forward.1} parent=0 // pred_check_branch
    %14 = sbr.rel (0) target = $region5
  $region4: #{valuenet_forward.1} parent=0 // pred_region
    _
  $region5: #{valuenet_forward.1} parent=0 // pred_fallthru
    _
  // Predicated region
  $region6: #{valuenet_forward.1} parent=0 // pred_check
    _
  $region7: #{valuenet_forward.1} parent=0 // pred_check_branch
    %16 = sbr.rel (0) target = $region9
  $region8: #{valuenet_forward.1} parent=0 // pred_region
    _
  $region9: #{valuenet_forward.1} parent=0 // pred_fallthru
    _
  // Predicated region
  $region10: #{valuenet_forward.1} parent=0 // pred_check
    _
  $region11: #{valuenet_forward.1} parent=0 // pred_check_branch
    %18 = sbr.rel (0) target = $region13
  $region12: #{valuenet_forward.1} parent=0 // pred_region
    _
  $region13: #{valuenet_forward.1} parent=0 // pred_fallthru
    _
  // Predicated region
  $region14: #{valuenet_forward.1} parent=0 // pred_check
    _
  $region15: #{valuenet_forward.1} parent=0 // pred_check_branch
    %20 = sbr.rel (0) target = $region17
  $region16: #{valuenet_forward.1} parent=0 // pred_region
    _
  $region17: #{valuenet_forward.1} parent=0 // pred_fallthru
    _
  // Predicated region
  $region18: #{valuenet_forward.1} parent=0 // pred_check
    _
  $region19: #{valuenet_forward.1} parent=0 // pred_check_branch
    %22 = sbr.rel (0) target = $region21
  $region20: #{valuenet_forward.1} parent=0 // pred_region
    _
  $region21: #{valuenet_forward.1} parent=0 // pred_fallthru
    _
  // Predicated region
  $region22: #{valuenet_forward.1} parent=0 // pred_check
    _
  $region23: #{valuenet_forward.1} parent=0 // pred_check_branch
    %24 = sbr.rel (0) target = $region25
  $region24: #{valuenet_forward.1} parent=0 // pred_region
    _
  $region25: #{valuenet_forward.1} parent=0 // pred_fallthru
    _
  // Predicated region
  $region26: #{valuenet_forward.1} parent=0 // pred_check
    _
  $region27: #{valuenet_forward.1} parent=0 // pred_check_branch
    %26 = sbr.rel (0) target = $region29
  $region28: #{valuenet_forward.1} parent=0 // pred_region
    _
  $region29: #{valuenet_forward.1} parent=0 // pred_fallthru
    _
  %v28 = vld [vmem:[%s0] sm:$0xf]
  %v29 = vld [vmem:[%s0 + $0x4] sm:$0xf]
  %v30 = vld [vmem:[%s0 + $0x8] sm:$0xf]
  %v31 = vld [vmem:[%s0 + $0xc] sm:$0xf]
  %v32 = vld [vmem:[%s0 + $0x10] sm:$0xf]
  %v33 = vld [vmem:[%s0 + $0x14] sm:$0xf]
  %v34 = vld [vmem:[%s0 + $0x18] sm:$0xf]
  %v35 = vld [vmem:[%s0 + $0x1c] sm:$0xf]
  %v36 = vld [vmem:[%s0 + $0x20] sm:$0xf]
  %v37 = vld [vmem:[%s0 + $0x24] sm:$0xf]
  %v38 = vld [vmem:[%s0 + $0x28] sm:$0xf]
  %v39 = vld [vmem:[%s0 + $0x2c] sm:$0xf]
  %v40 = vld [vmem:[%s0 + $0x30] sm:$0xf]
  %v41 = vld [vmem:[%s0 + $0x34] sm:$0xf]
  %v42 = vld [vmem:[%s0 + $0x38] sm:$0xf]
  %v43 = vld [vmem:[%s0 + $0x3c] sm:$0xf]
  %v44 = vld [vmem:[%s1] sm:$0xf]
  %v45 = vld [vmem:[%s1 + $0x4] sm:$0xf]
  %v46 = vld [vmem:[%s1 + $0x8] sm:$0xf]
  %v47 = vld [vmem:[%s1 + $0xc] sm:$0xf]
  %v48 = vld [vmem:[%s2] sm:$0x1]
  %v50 = vlaneseq
  %v51 = vshrl.u32 %v50, 7
  %v52 = vsub.s32 0, %v51
  %v53 = vrot.slane %v48, %v52
  %v71 = vunpack.c.l.b16 %v28
  %v72 = vunpack.c.l.b16 %v29
  %v73 = vunpack.c.l.b16 %v30
  %v74 = vunpack.c.l.b16 %v31
  %v75 = vunpack.c.l.b16 %v32
  %v76 = vunpack.c.l.b16 %v33
  %v77 = vunpack.c.l.b16 %v34
  %v78 = vunpack.c.l.b16 %v35
  %v79 = vunpack.c.l.b16 %v36
  %v80 = vunpack.c.l.b16 %v37
  %v81 = vunpack.c.l.b16 %v38
  %v82 = vunpack.c.l.b16 %v39
  %v83 = vunpack.c.l.b16 %v40
  %v84 = vunpack.c.l.b16 %v41
  %v85 = vunpack.c.l.b16 %v42
  %v86 = vunpack.c.l.b16 %v43
  %v87 = vpack.c.b16 %v72, %v71
  %v88 = vpack.c.b16 %v74, %v73
  %v89 = vpack.c.b16 %v76, %v75
  %v90 = vpack.c.b16 %v78, %v77
  %v91 = vpack.c.b16 %v80, %v79
  %v92 = vpack.c.b16 %v82, %v81
  %v93 = vpack.c.b16 %v84, %v83
  %v94 = vpack.c.b16 %v86, %v85
  %v99 = vunpack.c.l.b16 %v44
  %v100 = vunpack.c.l.b16 %v45
  %v101 = vunpack.c.l.b16 %v46
  %v102 = vunpack.c.l.b16 %v47
  %v103 = vpack.c.b16 %v100, %v99
  %v104 = vpack.c.b16 %v102, %v101
  %vm107 = vcmask 261120
  %v109 = vsel %vm107, %v87, 0
  %v112 = vsel %vm107, %v88, 0
  %v115 = vsel %vm107, %v89, 0
  %v118 = vsel %vm107, %v90, 0
  %v121 = vsel %vm107, %v91, 0
  %v124 = vsel %vm107, %v92, 0
  %v127 = vsel %vm107, %v93, 0
  %v130 = vsel %vm107, %v94, 0
  %132 = vmatprep.subr.bf16.mxu0 0
  %133 = vmatpush1.bf16.msra.mxu0 %v103
  %134 = vmatprep.subr.bf16.mxu0 0
  %135 = vmatpush1.bf16.msra.mxu0 %v104
  %136 = vmatprep.subr.bf16.mxu0 0
  %137 = vmatpush1.bf16.msra.mxu0 0
  %138 = vmatprep.subr.bf16.mxu0 0
  %139 = vmatpush1.bf16.msra.mxu0 0
  %140 = vmatprep.subr.bf16.mxu0 0
  %141 = vmatpush1.bf16.msra.mxu0 0
  %142 = vmatprep.subr.bf16.mxu0 0
  %143 = vmatpush1.bf16.msra.mxu0 0
  %144 = vmatprep.subr.bf16.mxu0 0
  %145 = vmatpush1.bf16.msra.mxu0 0
  %146 = vmatprep.subr.bf16.mxu0 0
  %147 = vmatpush1.bf16.msra.mxu0 0
  %148 = vmatprep.subr.bf16.mxu0 0
  %149 = vmatpush1.bf16.msra.mxu0 0
  %150 = vmatprep.subr.bf16.mxu0 0
  %151 = vmatpush1.bf16.msra.mxu0 0
  %152 = vmatprep.subr.bf16.mxu0 0
  %153 = vmatpush1.bf16.msra.mxu0 0
  %154 = vmatprep.subr.bf16.mxu0 0
  %155 = vmatpush1.bf16.msra.mxu0 0
  %156 = vmatprep.subr.bf16.mxu0 0
  %157 = vmatpush1.bf16.msra.mxu0 0
  %158 = vmatprep.subr.bf16.mxu0 0
  %159 = vmatpush1.bf16.msra.mxu0 0
  %160 = vmatprep.subr.bf16.mxu0 0
  %161 = vmatpush1.bf16.msra.mxu0 0
  %162 = vmatprep.subr.bf16.mxu0 0
  %163 = vmatpush1.bf16.msra.mxu0 0
  %164 = vmatprep.mubr.bf16.mxu0 0
  %165 = vmatmul.mubr.bf16.gmra.mrb[0].mxu0 %v109
  %v166 = vpop.f32.mrb[0].mxu0
  %v167 = vadd.f32 %v53, %v166
  %v168 = vpop.f32.mrb[0].mxu0
  %v169 = vpop.f32.mrb[0].mxu0
  %v170 = vadd.f32 %v53, %v169
  %v171 = vpop.f32.mrb[0].mxu0
  %172 = vmatprep.mubr.bf16.mxu0 0
  %173 = vmatmul.mubr.bf16.gmra.mrb[0].mxu0 %v112
  %v174 = vpop.f32.mrb[0].mxu0
  %v175 = vadd.f32 %v53, %v174
  %v176 = vpop.f32.mrb[0].mxu0
  %v177 = vpop.f32.mrb[0].mxu0
  %v178 = vadd.f32 %v53, %v177
  %v179 = vpop.f32.mrb[0].mxu0
  %180 = vmatprep.mubr.bf16.mxu0 0
  %181 = vmatmul.mubr.bf16.gmra.mrb[0].mxu0 %v115
  %v182 = vpop.f32.mrb[0].mxu0
  %v183 = vadd.f32 %v53, %v182
  %v184 = vpop.f32.mrb[0].mxu0
  %v185 = vpop.f32.mrb[0].mxu0
  %v186 = vadd.f32 %v53, %v185
  %v187 = vpop.f32.mrb[0].mxu0
  %188 = vmatprep.mubr.bf16.mxu0 0
  %189 = vmatmul.mubr.bf16.gmra.mrb[0].mxu0 %v118
  %v190 = vpop.f32.mrb[0].mxu0
  %v191 = vadd.f32 %v53, %v190
  %v192 = vpop.f32.mrb[0].mxu0
  %v193 = vpop.f32.mrb[0].mxu0
  %v194 = vadd.f32 %v53, %v193
  %v195 = vpop.f32.mrb[0].mxu0
  %196 = vmatprep.mubr.bf16.mxu0 0
  %197 = vmatmul.mubr.bf16.gmra.mrb[0].mxu0 %v121
  %v198 = vpop.f32.mrb[0].mxu0
  %v199 = vadd.f32 %v53, %v198
  %v200 = vpop.f32.mrb[0].mxu0
  %v201 = vpop.f32.mrb[0].mxu0
  %v202 = vadd.f32 %v53, %v201
  %v203 = vpop.f32.mrb[0].mxu0
  %204 = vmatprep.mubr.bf16.mxu0 0
  %205 = vmatmul.mubr.bf16.gmra.mrb[0].mxu0 %v124
  %v206 = vpop.f32.mrb[0].mxu0
  %v207 = vadd.f32 %v53, %v206
  %v208 = vpop.f32.mrb[0].mxu0
  %v209 = vpop.f32.mrb[0].mxu0
  %v210 = vadd.f32 %v53, %v209
  %v211 = vpop.f32.mrb[0].mxu0
  %212 = vmatprep.mubr.bf16.mxu0 0
  %213 = vmatmul.mubr.bf16.gmra.mrb[0].mxu0 %v127
  %v214 = vpop.f32.mrb[0].mxu0
  %v215 = vadd.f32 %v53, %v214
  %v216 = vpop.f32.mrb[0].mxu0
  %v217 = vpop.f32.mrb[0].mxu0
  %v218 = vadd.f32 %v53, %v217
  %v219 = vpop.f32.mrb[0].mxu0
  %220 = vmatprep.mubr.bf16.mxu0 0
  %221 = vmatmul.mubr.bf16.gmra.mrb[0].mxu0 %v130
  %v222 = vpop.f32.mrb[0].mxu0
  %v223 = vadd.f32 %v53, %v222
  %v224 = vpop.f32.mrb[0].mxu0
  %v225 = vpop.f32.mrb[0].mxu0
  %v226 = vadd.f32 %v53, %v225
  %v227 = vpop.f32.mrb[0].mxu0
  %228 = vdwg.mxu0
  %v229 = vmax.f32 %v167, 0.0
  %v230 = vmax.f32 %v170, 0.0
  %v231 = vmax.f32 %v175, 0.0
  %v232 = vmax.f32 %v178, 0.0
  %v233 = vmax.f32 %v183, 0.0
  %v234 = vmax.f32 %v186, 0.0
  %v235 = vmax.f32 %v191, 0.0
  %v236 = vmax.f32 %v194, 0.0
  %v237 = vmax.f32 %v199, 0.0
  %v238 = vmax.f32 %v202, 0.0
  %v239 = vmax.f32 %v207, 0.0
  %v240 = vmax.f32 %v210, 0.0
  %v241 = vmax.f32 %v215, 0.0
  %v242 = vmax.f32 %v218, 0.0
  %v243 = vmax.f32 %v223, 0.0
  %v244 = vmax.f32 %v226, 0.0
  %v245 = vpack.c.bf16 %v230, %v229
  %v246 = vpack.c.bf16 %v232, %v231
  %v247 = vpack.c.bf16 %v234, %v233
  %v248 = vpack.c.bf16 %v236, %v235
  %v249 = vpack.c.bf16 %v238, %v237
  %v250 = vpack.c.bf16 %v240, %v239
  %v251 = vpack.c.bf16 %v242, %v241
  %v252 = vpack.c.bf16 %v244, %v243
  %v253 = vld [vmem:[%s3] sm:$0xf]
  %v254 = vld [vmem:[%s3 + $0x4] sm:$0xf]
  %v255 = vld [vmem:[%s3 + $0x8] sm:$0xf]
  %v256 = vld [vmem:[%s3 + $0xc] sm:$0xf]
  %v257 = vld [vmem:[%s3 + $0x10] sm:$0xf]
  %v258 = vld [vmem:[%s3 + $0x14] sm:$0xf]
  %v259 = vld [vmem:[%s3 + $0x18] sm:$0xf]
  %v260 = vld [vmem:[%s3 + $0x1c] sm:$0xf]
  %v261 = vld [vmem:[%s3 + $0x20] sm:$0xf]
  %v262 = vld [vmem:[%s3 + $0x24] sm:$0xf]
  %v263 = vld [vmem:[%s3 + $0x28] sm:$0xf]
  %v264 = vld [vmem:[%s3 + $0x2c] sm:$0xf]
  %v265 = vld [vmem:[%s3 + $0x30] sm:$0xf]
  %v266 = vld [vmem:[%s3 + $0x34] sm:$0xf]
  %v267 = vld [vmem:[%s3 + $0x38] sm:$0xf]
  %v268 = vld [vmem:[%s3 + $0x3c] sm:$0xf]
  %v269 = vld [vmem:[%s4] sm:$0x1]
  %v271 = vlaneseq
  %v272 = vshrl.u32 %v271, 7
  %v273 = vsub.s32 0, %v272
  %v274 = vrot.slane %v269, %v273
  %v292 = vunpack.c.l.b16 %v253
  %v293 = vunpack.c.l.b16 %v254
  %v294 = vunpack.c.l.b16 %v255
  %v295 = vunpack.c.l.b16 %v256
  %v296 = vunpack.c.l.b16 %v257
  %v297 = vunpack.c.l.b16 %v258
  %v298 = vunpack.c.l.b16 %v259
  %v299 = vunpack.c.l.b16 %v260
  %v300 = vunpack.c.l.b16 %v261
  %v301 = vunpack.c.l.b16 %v262
  %v302 = vunpack.c.l.b16 %v263
  %v303 = vunpack.c.l.b16 %v264
  %v304 = vunpack.c.l.b16 %v265
  %v305 = vunpack.c.l.b16 %v266
  %v306 = vunpack.c.l.b16 %v267
  %v307 = vunpack.c.l.b16 %v268
  %v308 = vpack.c.b16 %v293, %v292
  %v309 = vpack.c.b16 %v295, %v294
  %v310 = vpack.c.b16 %v297, %v296
  %v311 = vpack.c.b16 %v299, %v298
  %v312 = vpack.c.b16 %v301, %v300
  %v313 = vpack.c.b16 %v303, %v302
  %v314 = vpack.c.b16 %v305, %v304
  %v315 = vpack.c.b16 %v307, %v306
  %324 = vmatprep.subr.bf16.mxu0 0
  %325 = vmatpush1.bf16.msra.mxu0 %v308
  %326 = vmatprep.subr.bf16.mxu0 0
  %327 = vmatpush1.bf16.msra.mxu0 %v309
  %328 = vmatprep.subr.bf16.mxu0 0
  %329 = vmatpush1.bf16.msra.mxu0 %v310
  %330 = vmatprep.subr.bf16.mxu0 0
  %331 = vmatpush1.bf16.msra.mxu0 %v311
  %332 = vmatprep.subr.bf16.mxu0 0
  %333 = vmatpush1.bf16.msra.mxu0 %v312
  %334 = vmatprep.subr.bf16.mxu0 0
  %335 = vmatpush1.bf16.msra.mxu0 %v313
  %336 = vmatprep.subr.bf16.mxu0 0
  %337 = vmatpush1.bf16.msra.mxu0 %v314
  %338 = vmatprep.subr.bf16.mxu0 0
  %339 = vmatpush1.bf16.msra.mxu0 %v315
  %340 = vmatprep.subr.bf16.mxu0 0
  %341 = vmatpush1.bf16.msra.mxu0 0
  %342 = vmatprep.subr.bf16.mxu0 0
  %343 = vmatpush1.bf16.msra.mxu0 0
  %344 = vmatprep.subr.bf16.mxu0 0
  %345 = vmatpush1.bf16.msra.mxu0 0
  %346 = vmatprep.subr.bf16.mxu0 0
  %347 = vmatpush1.bf16.msra.mxu0 0
  %348 = vmatprep.subr.bf16.mxu0 0
  %349 = vmatpush1.bf16.msra.mxu0 0
  %350 = vmatprep.subr.bf16.mxu0 0
  %351 = vmatpush1.bf16.msra.mxu0 0
  %352 = vmatprep.subr.bf16.mxu0 0
  %353 = vmatpush1.bf16.msra.mxu0 0
  %354 = vmatprep.subr.bf16.mxu0 0
  %355 = vmatpush1.bf16.msra.mxu0 0
  %356 = vmatprep.mubr.bf16.mxu0 0
  %357 = vmatmul.mubr.bf16.gmra.mrb[0].mxu0 %v245
  %v358 = vpop.f32.mrb[0].mxu0
  %v359 = vadd.f32 %v274, %v358
  %v360 = vpop.f32.mrb[0].mxu0
  %v361 = vpop.f32.mrb[0].mxu0
  %v362 = vadd.f32 %v274, %v361
  %v363 = vpop.f32.mrb[0].mxu0
  %364 = vmatprep.mubr.bf16.mxu0 0
  %365 = vmatmul.mubr.bf16.gmra.mrb[0].mxu0 %v246
  %v366 = vpop.f32.mrb[0].mxu0
  %v367 = vadd.f32 %v274, %v366
  %v368 = vpop.f32.mrb[0].mxu0
  %v369 = vpop.f32.mrb[0].mxu0
  %v370 = vadd.f32 %v274, %v369
  %v371 = vpop.f32.mrb[0].mxu0
  %372 = vmatprep.mubr.bf16.mxu0 0
  %373 = vmatmul.mubr.bf16.gmra.mrb[0].mxu0 %v247
  %v374 = vpop.f32.mrb[0].mxu0
  %v375 = vadd.f32 %v274, %v374
  %v376 = vpop.f32.mrb[0].mxu0
  %v377 = vpop.f32.mrb[0].mxu0
  %v378 = vadd.f32 %v274, %v377
  %v379 = vpop.f32.mrb[0].mxu0
  %380 = vmatprep.mubr.bf16.mxu0 0
  %381 = vmatmul.mubr.bf16.gmra.mrb[0].mxu0 %v248
  %v382 = vpop.f32.mrb[0].mxu0
  %v383 = vadd.f32 %v274, %v382
  %v384 = vpop.f32.mrb[0].mxu0
  %v385 = vpop.f32.mrb[0].mxu0
  %v386 = vadd.f32 %v274, %v385
  %v387 = vpop.f32.mrb[0].mxu0
  %388 = vmatprep.mubr.bf16.mxu0 0
  %389 = vmatmul.mubr.bf16.gmra.mrb[0].mxu0 %v249
  %v390 = vpop.f32.mrb[0].mxu0
  %v391 = vadd.f32 %v274, %v390
  %v392 = vpop.f32.mrb[0].mxu0
  %v393 = vpop.f32.mrb[0].mxu0
  %v394 = vadd.f32 %v274, %v393
  %v395 = vpop.f32.mrb[0].mxu0
  %396 = vmatprep.mubr.bf16.mxu0 0
  %397 = vmatmul.mubr.bf16.gmra.mrb[0].mxu0 %v250
  %v398 = vpop.f32.mrb[0].mxu0
  %v399 = vadd.f32 %v274, %v398
  %v400 = vpop.f32.mrb[0].mxu0
  %v401 = vpop.f32.mrb[0].mxu0
  %v402 = vadd.f32 %v274, %v401
  %v403 = vpop.f32.mrb[0].mxu0
  %404 = vmatprep.mubr.bf16.mxu0 0
  %405 = vmatmul.mubr.bf16.gmra.mrb[0].mxu0 %v251
  %v406 = vpop.f32.mrb[0].mxu0
  %v407 = vadd.f32 %v274, %v406
  %v408 = vpop.f32.mrb[0].mxu0
  %v409 = vpop.f32.mrb[0].mxu0
  %v410 = vadd.f32 %v274, %v409
  %v411 = vpop.f32.mrb[0].mxu0
  %412 = vmatprep.mubr.bf16.mxu0 0
  %413 = vmatmul.mubr.bf16.gmra.mrb[0].mxu0 %v252
  %v414 = vpop.f32.mrb[0].mxu0
  %v415 = vadd.f32 %v274, %v414
  %v416 = vpop.f32.mrb[0].mxu0
  %v417 = vpop.f32.mrb[0].mxu0
  %v418 = vadd.f32 %v274, %v417
  %v419 = vpop.f32.mrb[0].mxu0
  %420 = vdwg.mxu0
  %v421 = vmax.f32 %v359, 0.0
  %v422 = vmax.f32 %v362, 0.0
  %v423 = vmax.f32 %v367, 0.0
  %v424 = vmax.f32 %v370, 0.0
  %v425 = vmax.f32 %v375, 0.0
  %v426 = vmax.f32 %v378, 0.0
  %v427 = vmax.f32 %v383, 0.0
  %v428 = vmax.f32 %v386, 0.0
  %v429 = vmax.f32 %v391, 0.0
  %v430 = vmax.f32 %v394, 0.0
  %v431 = vmax.f32 %v399, 0.0
  %v432 = vmax.f32 %v402, 0.0
  %v433 = vmax.f32 %v407, 0.0
  %v434 = vmax.f32 %v410, 0.0
  %v435 = vmax.f32 %v415, 0.0
  %v436 = vmax.f32 %v418, 0.0
  %437 = vxpose.xlu0.b32.start [1/16] %v421, 128
  %438 = vxpose.xlu0.b32.cont [2/16] %v422, 128
  %439 = vxpose.xlu0.b32.cont [3/16] %v423, 128
  %440 = vxpose.xlu0.b32.cont [4/16] %v424, 128
  %441 = vxpose.xlu0.b32.cont [5/16] %v425, 128
  %442 = vxpose.xlu0.b32.cont [6/16] %v426, 128
  %443 = vxpose.xlu0.b32.cont [7/16] %v427, 128
  %444 = vxpose.xlu0.b32.cont [8/16] %v428, 128
  %445 = vxpose.xlu0.b32.cont [9/16] %v429, 128
  %446 = vxpose.xlu0.b32.cont [10/16] %v430, 128
  %447 = vxpose.xlu0.b32.cont [11/16] %v431, 128
  %448 = vxpose.xlu0.b32.cont [12/16] %v432, 128
  %449 = vxpose.xlu0.b32.cont [13/16] %v433, 128
  %450 = vxpose.xlu0.b32.cont [14/16] %v434, 128
  %451 = vxpose.xlu0.b32.cont [15/16] %v435, 128
  %452 = vxpose.xlu0.b32.end [16/16] %v436, 128
  %v453 = vpop.trf.xlu0
  %v454 = vpop.trf.xlu0
  %v455 = vpop.trf.xlu0
  %v456 = vpop.trf.xlu0
  %v457 = vpop.trf.xlu0
  %v458 = vpop.trf.xlu0
  %v459 = vpop.trf.xlu0
  %v460 = vpop.trf.xlu0
  %v461 = vpop.trf.xlu0
  %v462 = vpop.trf.xlu0
  %v463 = vpop.trf.xlu0
  %v464 = vpop.trf.xlu0
  %v465 = vpop.trf.xlu0
  %v466 = vpop.trf.xlu0
  %v467 = vpop.trf.xlu0
  %v468 = vpop.trf.xlu0
  %v469 = vpack.c.bf16 %v454, %v453
  %v470 = vpack.c.bf16 %v456, %v455
  %v471 = vpack.c.bf16 %v458, %v457
  %v472 = vpack.c.bf16 %v460, %v459
  %v473 = vpack.c.bf16 %v462, %v461
  %v474 = vpack.c.bf16 %v464, %v463
  %v475 = vpack.c.bf16 %v466, %v465
  %v476 = vpack.c.bf16 %v468, %v467
  %v477 = vld [vmem:[%s5] sm:$0xf]
  %478 = vmatprep.subr.bf16.mxu0 0
  %479 = vmatpush1.bf16.msra.mxu0 %v469
  %480 = vmatprep.subr.bf16.mxu0 0
  %481 = vmatpush1.bf16.msra.mxu0 %v470
  %482 = vmatprep.subr.bf16.mxu0 0
  %483 = vmatpush1.bf16.msra.mxu0 %v471
  %484 = vmatprep.subr.bf16.mxu0 0
  %485 = vmatpush1.bf16.msra.mxu0 %v472
  %486 = vmatprep.subr.bf16.mxu0 0
  %487 = vmatpush1.bf16.msra.mxu0 %v473
  %488 = vmatprep.subr.bf16.mxu0 0
  %489 = vmatpush1.bf16.msra.mxu0 %v474
  %490 = vmatprep.subr.bf16.mxu0 0
  %491 = vmatpush1.bf16.msra.mxu0 %v475
  %492 = vmatprep.subr.bf16.mxu0 0
  %493 = vmatpush1.bf16.msra.mxu0 %v476
  %494 = vmatprep.subr.bf16.mxu0 0
  %495 = vmatpush1.bf16.msra.mxu0 0
  %496 = vmatprep.subr.bf16.mxu0 0
  %497 = vmatpush1.bf16.msra.mxu0 0
  %498 = vmatprep.subr.bf16.mxu0 0
  %499 = vmatpush1.bf16.msra.mxu0 0
  %500 = vmatprep.subr.bf16.mxu0 0
  %501 = vmatpush1.bf16.msra.mxu0 0
  %502 = vmatprep.subr.bf16.mxu0 0
  %503 = vmatpush1.bf16.msra.mxu0 0
  %504 = vmatprep.subr.bf16.mxu0 0
  %505 = vmatpush1.bf16.msra.mxu0 0
  %506 = vmatprep.subr.bf16.mxu0 0
  %507 = vmatpush1.bf16.msra.mxu0 0
  %508 = vmatprep.subr.bf16.mxu0 0
  %509 = vmatpush1.bf16.msra.mxu0 0
  %510 = vmatprep.mubr.bf16.mxu0 0
  %511 = vmatmul.mubr.bf16.gmra.mrb[0].mxu0 %v477
  %v512 = vpop.f32.mrb[0].mxu0
  %v513 = vadd.f32 0.0, %v512
  %v514 = vpop.f32.mrb[0].mxu0
  %v515 = vpop.f32.mrb[0].mxu0
  %v516 = vpop.f32.mrb[0].mxu0
  %517 = vdwg.mxu0
  %s518 = sld [smem:[#allocation2]]
  %v519 = vstv %s518
  %v520 = vadd.f32 %v513, %v519
  %521 = vst [vmem:[%s7] sm:$0x1] %v520
  // Predicated region
  $region30: #{valuenet_forward.1} parent=0 // pred_check
    _
  $region31: #{valuenet_forward.1} parent=0 // pred_check_branch
    %523 = sbr.rel (0) target = $region33
  $region32: #{valuenet_forward.1} parent=0 // pred_region
    _
  $region33: #{valuenet_forward.1} parent=0 // pred_fallthru
    _
  // Predicated region
  $region34: #{valuenet_forward.1} parent=0 // pred_check
    _
  $region35: #{valuenet_forward.1} parent=0 // pred_check_branch
    %525 = sbr.rel (0) target = $region37
  $region36: #{valuenet_forward.1} parent=0 // pred_region
    _
  $region37: #{valuenet_forward.1} parent=0 // pred_fallthru
    _

</llo_original>
